<compile_context>
chip_gen: v7x
topology: tpu7x:2x2x1
jax: 0.10.0
libtpu: 0.0.40
codegen_flags: <defaults>
</compile_context>

<pallas_src>
import functools

import jax
import jax.numpy as jnp
import numpy as np
from jax.experimental import pallas as pl
from jax.experimental.pallas import tpu as pltpu

# Hyperparameters from TACLoss.__init__ defaults (deterministic, no checkpoint).
TEMPERATURE = 0.07
ALPHA = 0.7
SMOOTH = 1.0
# ignore_label=-1 and gamma=1.5 are never used in the reference forward().

_DEFAULT_BUFFER_BUDGET = 8 * 1024 * 1024   # bytes per input pipeline buffer


def _vmem_capacity_bytes():
    """Physical VMEM of the local chip (fallback: 128 MiB, i.e. v5e/v6e)."""
    try:
        info = pltpu.get_tpu_info()
        cap = getattr(info, "vmem_capacity_bytes", None)
        if cap:
            return int(cap)
    except Exception:
        pass
    return 128 * 1024 * 1024


# ---------------------------------------------------------------------------
# Phase 1: streamed global pooling (spatial sums) over a tiled reduction grid.
# ---------------------------------------------------------------------------
def _pool_kernel(f1_ref, f2_ref, s1_ref, s2_ref, *, hw, lane_tile, kt, k_split):
    # f1_ref, f2_ref : (row_block, lane_tile) feature tiles, native dtype.
    # s1_ref, s2_ref : (row_block, 1) f32 accumulators, VMEM-resident across
    #                  the 'arbitrary' reduction axis.
    k = pl.program_id(1)
    if k_split:
        # Reduction axis split 2-way across the 'parallel' axis (v7x cores).
        g = pl.program_id(0) * pl.num_programs(1) + k   # global spatial block
    else:
        g = k

    @pl.when(k == 0)
    def _init():
        s1_ref[...] = jnp.zeros_like(s1_ref)
        s2_ref[...] = jnp.zeros_like(s2_ref)

    x1 = f1_ref[...]
    x2 = f2_ref[...]
    # 16-bit floats: MXU row-sum (tile @ ones, f32 acc).  f32 / ints: widened
    # VPU sum (avoids the multi-pass f32 MXU path; ~<=25% VALU per step).
    use_mxu = x1.dtype in (jnp.bfloat16, jnp.float16)

    def _accum(a1, a2):
        if use_mxu:
            ones = jnp.ones((a1.shape[1], 1), dtype=a1.dtype)
            dims = (((1,), (0,)), ((), ()))
            s1_ref[...] += jax.lax.dot_general(
                a1, ones, dims, preferred_element_type=jnp.float32)
            s2_ref[...] += jax.lax.dot_general(
                a2, ones, dims, preferred_element_type=jnp.float32)
        else:
            s1_ref[...] += jnp.sum(a1.astype(jnp.float32), axis=1, keepdims=True)
            s2_ref[...] += jnp.sum(a2.astype(jnp.float32), axis=1, keepdims=True)

    has_tail = (hw % lane_tile) != 0
    last = kt - 1

    if (not has_tail) and (not k_split):
        _accum(x1, x2)
    elif has_tail:
        # Unmasked fast path for every tile except the partially-OOB last one.
        @pl.when(g < last)
        def _full():
            _accum(x1, x2)

        @pl.when(g == last)
        def _tail():
            # Last-tile column mask is a trace-time constant (last is static).
            col = jax.lax.broadcasted_iota(jnp.int32, x1.shape, 1) + last * lane_tile
            valid = col < hw
            _accum(jnp.where(valid, x1, jnp.zeros_like(x1)),
                   jnp.where(valid, x2, jnp.zeros_like(x2)))
        # (k_split padding blocks with g > last fall through: no accumulate.)
    else:
        # k_split without a spatial tail: only skip padded (duplicate) blocks.
        @pl.when(g <= last)
        def _full():
            _accum(x1, x2)


# ---------------------------------------------------------------------------
# Phase 2: tiny BxB Tversky similarity + log-softmax + masked-mean epilogue.
# ---------------------------------------------------------------------------
def _tac_epilogue_kernel(p1_ref, p2_ref, lab_col_ref, lab_row_ref, out_ref, *,
                         inv_hw, temperature, alpha, smooth):
    p1 = p1_ref[...] * inv_hw          # pooled means, (B, C)
    p2 = p2_ref[...] * inv_hw

    # Tversky: TP[i,j] = <p1_i, p2_j>; FP = sum(p1_i) - TP; FN = sum(p2_j) - TP
    tp = jax.lax.dot_general(
        p1, p2, (((1,), (1,)), ((), ())), preferred_element_type=jnp.float32)
    s1 = jnp.sum(p1, axis=1, keepdims=True)           # (B, 1)
    s2 = jnp.sum(p2, axis=1, keepdims=True)           # (B, 1)
    fp = s1 - tp
    fn = jnp.transpose(s2) - tp
    sim = (tp + smooth) / (tp + alpha * fp + (1.0 - alpha) * fn + smooth)
    sim = sim / temperature

    pos_mask = (lab_col_ref[...] == lab_row_ref[...]).astype(jnp.float32)  # (B,B)

    # Row-wise log-softmax with m = max(row_max, 0):
    #   log(sum(exp(sim)) + 1e-8) == m + log(sum(exp(sim - m)) + 1e-8 * exp(-m))
    # exact and overflow-free (exp arguments <= 0, exp(-m) <= 1).
    row_max = jnp.maximum(jnp.max(sim, axis=1, keepdims=True), 0.0)
    sum_exp = (jnp.sum(jnp.exp(sim - row_max), axis=1, keepdims=True)
               + 1e-8 * jnp.exp(-row_max))
    log_prob = sim - (row_max + jnp.log(sum_exp))

    pos_count = jnp.sum(pos_mask, axis=1, keepdims=True)     # (B, 1)
    valid = pos_count > 0.0
    mean_log_prob_pos = jnp.sum(pos_mask * log_prob, axis=1, keepdims=True) / (
        pos_count + 1e-8)

    num_valid = jnp.sum(valid.astype(jnp.float32))
    total = jnp.sum(jnp.where(valid, mean_log_prob_pos, 0.0))
    # If no valid rows the reference returns 0.0; total is 0 then as well.
    out_ref[0, 0] = -total / jnp.maximum(num_valid, 1.0)


# ---------------------------------------------------------------------------
# Glue
# ---------------------------------------------------------------------------
def _choose_tiles(bc, hw, itemsize, buffer_budget):
    """Pick (row_splits, row_block, lane_tile, sublane_pack)."""
    pack = 8 * max(4 // itemsize, 1)          # 8 (32-bit) / 16 (bf16) / 32 (int8)
    # Row split across TensorCores only if both halves keep sublane packing.
    nb = 2 if (bc >= 2 * pack and bc % (2 * pack) == 0) else 1
    row_block = bc // nb
    # If even a single 128-lane column exceeds the buffer budget, keep halving
    # the rows while packing allows it.
    while row_block * 128 * itemsize > buffer_budget and row_block % (2 * pack) == 0:
        nb *= 2
        row_block //= 2
    # Byte-budgeted spatial tile (NO hard lane cap); multiple of 128 lanes.
    t = (buffer_budget // max(row_block * itemsize, 1)) // 128 * 128
    t = max(t, 128)
    if hw <= t:
        t = hw          # single full-extent lane tile: no masking needed
    return nb, row_block, t, pack


def tac_loss_pallas(features1, features2, labels,
                    temperature=TEMPERATURE, alpha=ALPHA, smooth=SMOOTH,
                    buffer_budget_bytes=None):
    """Reproduce the shape-conditional preprocessing, then run the kernels."""
    if features1.ndim == 4:
        b, c, h, w = features1.shape
        hw = h * w
    else:
        b, c = features1.shape
        hw = 1

    # --- label handling (torch: argmax / squeeze / view / take column 0) ---
    if labels.ndim == 4 and labels.shape[1] > 1:
        labels = jnp.argmax(labels, axis=1)
    elif labels.ndim == 4 and labels.shape[1] == 1:
        labels = labels[:, 0]
    labels = labels.reshape(labels.shape[0], -1)
    sample_labels = labels[:, 0].astype(jnp.int32)
    lab_col = sample_labels.reshape(b, 1)
    lab_row = sample_labels.reshape(1, b)

    if hw == 1:
        # Already-pooled features: Phase 1 would be pure overhead.
        pooled1 = features1.reshape(b, c).astype(jnp.float32)
        pooled2 = features2.reshape(b, c).astype(jnp.float32)
        inv_hw = 1.0
    else:
        # 2-D (B*C, HW) packs sublanes densely; keep the native dtype
        # (no glue-side upcast — widening happens inside the kernel).
        f1 = features1.reshape(b * c, hw)
        f2 = features2.reshape(b * c, hw)
        bc = b * c
        itemsize = jnp.dtype(f1.dtype).itemsize
        budget = int(buffer_budget_bytes or _DEFAULT_BUFFER_BUDGET)
        nb, row_block, lane_tile, pack = _choose_tiles(bc, hw, itemsize, budget)
        kt = pl.cdiv(hw, lane_tile)
        # If rows can't be split, split the reduction axis across the two
        # TensorCores instead (partial sums added below).
        k_split = (nb == 1) and (kt >= 2) and (bc % pack == 0)

        if k_split:
            kt_per = pl.cdiv(kt, 2)
            grid = (2, kt_per)

            def in_map(s, k):
                # Clamp padded (duplicate) blocks in-bounds; kernel skips them.
                return (0, jnp.minimum(s * kt_per + k, kt - 1))

            out_map = lambda s, k: (s, 0)
            out_rows = 2 * bc
        else:
            grid = (nb, kt)
            in_map = lambda r, k: (r, k)
            out_map = lambda r, k: (r, 0)
            out_rows = bc

        # 2 inputs x 2 pipeline buffers, plus headroom; generation-aware ceiling.
        need = 4 * row_block * lane_tile * itemsize
        cap = _vmem_capacity_bytes()
        ceiling = 56 * 2**20 if cap <= 64 * 2**20 else 100 * 2**20
        vmem_limit = int(min(max(int(1.4 * need) + (2 << 20), 32 * 2**20), ceiling))

        pool_kernel = functools.partial(
            _pool_kernel, hw=hw, lane_tile=lane_tile, kt=kt, k_split=k_split)
        s1, s2 = pl.pallas_call(
            pool_kernel,
            out_shape=(jax.ShapeDtypeStruct((out_rows, 1), jnp.float32),
                       jax.ShapeDtypeStruct((out_rows, 1), jnp.float32)),
            grid=grid,
            in_specs=[
                pl.BlockSpec((row_block, lane_tile), in_map),
                pl.BlockSpec((row_block, lane_tile), in_map),
            ],
            out_specs=[
                pl.BlockSpec((row_block, 1), out_map),
                pl.BlockSpec((row_block, 1), out_map),
            ],
            compiler_params=pltpu.CompilerParams(
                dimension_semantics=("parallel", "arbitrary"),
                vmem_limit_bytes=vmem_limit),
            cost_estimate=pl.CostEstimate(
                flops=2 * bc * hw, transcendentals=0,
                bytes_accessed=2 * bc * hw * itemsize + 2 * bc * 4),
        )(f1, f2)

        if k_split:
            s1 = s1[:bc] + s1[bc:]
            s2 = s2[:bc] + s2[bc:]
        pooled1 = s1.reshape(b, c)   # free XLA reshape between the two kernels
        pooled2 = s2.reshape(b, c)
        inv_hw = 1.0 / float(hw)

    epi_kernel = functools.partial(
        _tac_epilogue_kernel, inv_hw=float(inv_hw),
        temperature=float(temperature), alpha=float(alpha), smooth=float(smooth))
    out = pl.pallas_call(
        epi_kernel,
        out_shape=jax.ShapeDtypeStruct((1, 1), jnp.float32),
        grid=(1,),
        in_specs=[
            pl.BlockSpec((b, c), lambda i: (0, 0)),
            pl.BlockSpec((b, c), lambda i: (0, 0)),
            pl.BlockSpec((b, 1), lambda i: (0, 0)),
            pl.BlockSpec((1, b), lambda i: (0, 0)),
        ],
        out_specs=pl.BlockSpec((1, 1), lambda i: (0, 0)),
    )(pooled1, pooled2, lab_col, lab_row)
    return out[0, 0]


def tac_loss_ref(features1, features2, labels,
                 temperature=TEMPERATURE, alpha=ALPHA, smooth=SMOOTH):
    """Pure-JAX reference mirroring the PyTorch forward exactly."""
    if features1.ndim == 4:
        p1 = jnp.mean(features1, axis=(2, 3))
        p2 = jnp.mean(features2, axis=(2, 3))
    else:
        p1, p2 = features1, features2
    if labels.ndim == 4 and labels.shape[1] > 1:
        labels = jnp.argmax(labels, axis=1)
    elif labels.ndim == 4 and labels.shape[1] == 1:
        labels = labels[:, 0]
    labels = labels.reshape(labels.shape[0], -1)
    sl = labels[:, 0]
    z1 = p1[:, None, :].astype(jnp.float32)
    z2 = p2[None, :, :].astype(jnp.float32)
    tp = jnp.sum(z1 * z2, axis=2)
    fp = jnp.sum(z1 * (1 - z2), axis=2)
    fn = jnp.sum((1 - z1) * z2, axis=2)
    sim = (tp + smooth) / (tp + alpha * fp + (1 - alpha) * fn + smooth) / temperature
    pos = (sl[:, None] == sl[None, :]).astype(jnp.float32)
    exp_sim = jnp.exp(sim)
    sum_exp = jnp.sum(exp_sim, axis=1, keepdims=True) + 1e-8
    log_prob = sim - jnp.log(sum_exp)
    cnt = jnp.sum(pos, axis=1)
    valid = cnt > 0
    mlpp = jnp.sum(pos * log_prob, axis=1) / (cnt + 1e-8)
    return -jnp.sum(jnp.where(valid, mlpp, 0.0)) / jnp.maximum(
        jnp.sum(valid.astype(jnp.float32)), 1.0)


if __name__ == "__main__":
    key = jax.random.PRNGKey(0)
    k1, k2, k3, k4, k5, k6 = jax.random.split(key, 6)

    # Case 1: canonical 4-D segmentation-style inputs (row-split path).
    B, C, H, W = 8, 4, 16, 16
    features1 = jax.random.normal(k1, (B, C, H, W), dtype=jnp.float32)
    features2 = jax.random.normal(k2, (B, C, H, W), dtype=jnp.float32)
    labels = jax.random.randint(k3, (B, 1, H, W), 0, 3, dtype=jnp.int32)
    loss = jax.block_until_ready(tac_loss_pallas(features1, features2, labels))
    loss_ref = jax.block_until_ready(tac_loss_ref(features1, features2, labels))
    np.testing.assert_allclose(np.asarray(loss), np.asarray(loss_ref),
                               rtol=1e-4, atol=1e-4)

    # Case 2: odd spatial extent + tiny buffer budget to exercise the
    # pl.when-gated tail mask and the reduction-axis (k) core split.
    B2, C2, H2, W2 = 4, 2, 17, 19
    g1 = jax.random.normal(k4, (B2, C2, H2, W2), dtype=jnp.float32)
    g2 = jax.random.normal(k5, (B2, C2, H2, W2), dtype=jnp.float32)
    lab2 = jax.random.randint(k6, (B2, H2, W2), 0, 2, dtype=jnp.int32)
    out2 = jax.block_until_ready(
        tac_loss_pallas(g1, g2, lab2, buffer_budget_bytes=4096))
    ref2 = jax.block_until_ready(tac_loss_ref(g1, g2, lab2))
    np.testing.assert_allclose(np.asarray(out2), np.asarray(ref2),
                               rtol=1e-4, atol=1e-4)

    # Case 3: already-pooled 2-D features (Phase-1 bypass), non-negative so
    # the unstabilized reference softmax stays finite.
    h1 = jax.random.uniform(k1, (6, 5), dtype=jnp.float32)
    h2 = jax.random.uniform(k2, (6, 5), dtype=jnp.float32)
    lab3 = jnp.array([0, 1, 0, 2, 1, 2], dtype=jnp.int32)
    out3 = jax.block_until_ready(tac_loss_pallas(h1, h2, lab3))
    ref3 = jax.block_until_ready(tac_loss_ref(h1, h2, lab3))
    np.testing.assert_allclose(np.asarray(out3), np.asarray(ref3),
                               rtol=1e-4, atol=1e-4)

    print("KERNEL_OK")
</pallas_src>

<mosaic_0001>
module attributes {stable_mosaic.version = 11 : i64} {
  func.func @_pool_kernel(%arg0: i32, %arg1: i32, %arg2: memref<16x256xf32, #tpu.memory_space<vmem>>, %arg3: memref<16x256xf32, #tpu.memory_space<vmem>>, %arg4: memref<16x1xf32, #tpu.memory_space<vmem>>, %arg5: memref<16x1xf32, #tpu.memory_space<vmem>>) attributes {dimension_semantics = [#tpu.dimension_semantics<parallel>, #tpu.dimension_semantics<arbitrary>], iteration_bounds = array<i64: 2, 1>, scalar_prefetch = 0 : i64, scratch_operands = 0 : i64, tpu.core_type = #tpu.core_type<tc>, window_params = [{transform_indices = @transform_0, window_bounds = array<i64: 16, 256>}, {transform_indices = @transform_1, window_bounds = array<i64: 16, 256>}, {transform_indices = @transform_2, window_bounds = array<i64: 16, 1>}, {transform_indices = @transform_3, window_bounds = array<i64: 16, 1>}]} {
    %c0_i32 = arith.constant 0 : i32
    %0 = arith.cmpi eq, %arg1, %c0_i32 : i32
    %1 = arith.extui %0 : i1 to i32
    %c0_i32_0 = arith.constant 0 : i32
    %2 = arith.cmpi ne, %1, %c0_i32_0 : i32
    scf.if %2 {
      %cst_13 = arith.constant 0.000000e+00 : f32
      %15 = vector.broadcast %cst_13 : f32 to vector<16x1xf32>
      %c0_14 = arith.constant 0 : index
      %c0_15 = arith.constant 0 : index
      %16 = vector.load %arg4[%c0_14, %c0_15] : memref<16x1xf32, #tpu.memory_space<vmem>>, vector<16x1xf32>
      tpu.vector_store %arg4[%c0_14, %c0_15], %15 {strides = array<i32>} : memref<16x1xf32, #tpu.memory_space<vmem>>, vector<16x1xf32>,
      %cst_16 = arith.constant 0.000000e+00 : f32
      %17 = vector.broadcast %cst_16 : f32 to vector<16x1xf32>
      %c0_17 = arith.constant 0 : index
      %c0_18 = arith.constant 0 : index
      %18 = vector.load %arg5[%c0_17, %c0_18] : memref<16x1xf32, #tpu.memory_space<vmem>>, vector<16x1xf32>
      tpu.vector_store %arg5[%c0_17, %c0_18], %17 {strides = array<i32>} : memref<16x1xf32, #tpu.memory_space<vmem>>, vector<16x1xf32>,
    } else {
    }
    %c0 = arith.constant 0 : index
    %c0_1 = arith.constant 0 : index
    %3 = vector.load %arg2[%c0, %c0_1] : memref<16x256xf32, #tpu.memory_space<vmem>>, vector<16x256xf32>
    %c0_2 = arith.constant 0 : index
    %c0_3 = arith.constant 0 : index
    %4 = vector.load %arg3[%c0_2, %c0_3] : memref<16x256xf32, #tpu.memory_space<vmem>>, vector<16x256xf32>
    %c0_4 = arith.constant 0 : index
    %c0_5 = arith.constant 0 : index
    %5 = vector.load %arg4[%c0_4, %c0_5] : memref<16x1xf32, #tpu.memory_space<vmem>>, vector<16x1xf32>
    %cst = arith.constant dense<0.000000e+00> : vector<16xf32>
    %6 = vector.multi_reduction <add>, %3, %cst [1] : vector<16x256xf32> to vector<16xf32>
    %7 = vector.shape_cast %6 : vector<16xf32> to vector<16x1xf32>
    %8 = arith.addf %5, %7 : vector<16x1xf32>
    %c0_6 = arith.constant 0 : index
    %c0_7 = arith.constant 0 : index
    %9 = vector.load %arg4[%c0_6, %c0_7] : memref<16x1xf32, #tpu.memory_space<vmem>>, vector<16x1xf32>
    tpu.vector_store %arg4[%c0_6, %c0_7], %8 {strides = array<i32>} : memref<16x1xf32, #tpu.memory_space<vmem>>, vector<16x1xf32>,
    %c0_8 = arith.constant 0 : index
    %c0_9 = arith.constant 0 : index
    %10 = vector.load %arg5[%c0_8, %c0_9] : memref<16x1xf32, #tpu.memory_space<vmem>>, vector<16x1xf32>
    %cst_10 = arith.constant dense<0.000000e+00> : vector<16xf32>
    %11 = vector.multi_reduction <add>, %4, %cst_10 [1] : vector<16x256xf32> to vector<16xf32>
    %12 = vector.shape_cast %11 : vector<16xf32> to vector<16x1xf32>
    %13 = arith.addf %10, %12 : vector<16x1xf32>
    %c0_11 = arith.constant 0 : index
    %c0_12 = arith.constant 0 : index
    %14 = vector.load %arg5[%c0_11, %c0_12] : memref<16x1xf32, #tpu.memory_space<vmem>>, vector<16x1xf32>
    tpu.vector_store %arg5[%c0_11, %c0_12], %13 {strides = array<i32>} : memref<16x1xf32, #tpu.memory_space<vmem>>, vector<16x1xf32>,
    return
  }
  func.func @transform_0(%arg0: i32, %arg1: i32) -> (i32, i32) {
    %c0_i32 = arith.constant 0 : i32
    return %arg0, %arg1 : i32, i32
  }
  func.func @transform_1(%arg0: i32, %arg1: i32) -> (i32, i32) {
    %c0_i32 = arith.constant 0 : i32
    return %arg0, %arg1 : i32, i32
  }
  func.func @transform_2(%arg0: i32, %arg1: i32) -> (i32, i32) {
    %c0_i32 = arith.constant 0 : i32
    %c0_i32_0 = arith.constant 0 : i32
    return %arg0, %c0_i32 : i32, i32
  }
  func.func @transform_3(%arg0: i32, %arg1: i32) -> (i32, i32) {
    %c0_i32 = arith.constant 0 : i32
    %c0_i32_0 = arith.constant 0 : i32
    return %arg0, %c0_i32 : i32, i32
  }
}

</mosaic_0001>

<llo_original>
// kernel: tpu_custom_call.1
$region0: #{tpu_custom_call.1}
  #allocation0 [shape = 'u32[]', space=smem, size = 0x4, offset = 0x4, fixed_abs, tag = 'smem constant byte address 0x4 - core index']
  #allocation1 [shape = 'u32[144,128]{1,0:T(1,128)}', space=vmem, size = 0x12000, scoped, tag = 'internal scratch']
  %s0 = inlined_call_operand.hbm [shape: f32[32,256], index: 0, kind: input, shape index: {}]
  %s1 = inlined_call_operand.hbm [shape: f32[32,256], index: 1, kind: input, shape index: {}]
  %s2 = inlined_call_operand.vmem [shape: f32[32,1], index: 2, kind: output, shape index: {0}]
  %s3 = inlined_call_operand.vmem [shape: f32[32,1], index: 3, kind: output, shape index: {1}]
  %4 = xla_tuple %s2, %s3
  %s5 = sld [smem:[#allocation0]]
  $region61: #{tpu_custom_call.1} parent=0
    _
  %s7 = ssub.s32 1, %s5
  %s8 = scalar_select 0, %s7, %s5
  $region1: #{tpu_custom_call.1} parent=0
    #allocation2 [shape = 'u8[32768]{0}', space=vmem, size = 0x8000, scoped, tag = 'input window, operand 0']
    #allocation3 [shape = 's32[2]{0}', space=sflag, size = 0x8, scoped, tag = 'scoped memory for tpu_custom_call.1']
    #allocation4 [shape = 'u8[32768]{0}', space=vmem, size = 0x8000, scoped, tag = 'input window, operand 1']
    #allocation5 [shape = 's32[2]{0}', space=sflag, size = 0x8, scoped, tag = 'scoped memory for tpu_custom_call.1']
    %9 = vsyncpa [#allocation3], 0
    %s10 = scalar_lea.sflag [#allocation3], 1
    %11 = vsyncpa %s10, 0
    %12 = vsyncpa [#allocation5], 0
    %s13 = scalar_lea.sflag [#allocation5], 1
    %14 = vsyncpa %s13, 0
    loop: start=0, step=1, limit=4
    $region2: #{tpu_custom_call.1} parent=1 // loop_pre_header
      _
    $region3: #{tpu_custom_call.1} parent=1 // loop_header
      %s16 = sphi 0, %s20
      %p17 = scmp.ge.s32.totalorder %s16, 4
      %s23 = sphi 0, %s35
      %s24 = sphi 0, %s31
      %s25 = sphi 0, %s23
      %s26 = sphi 0, %s24
      %s27 = sphi 0, %s25
      %s28 = sphi 0, %s26
      %s40 = sphi 0, %s42
      %s43 = sphi 0, %s40
      %s44 = sphi 0, %s43
      %s60 = sphi 0, %s44
      %s68 = sphi 0, %s70
      %s71 = sphi 0, %s68
      %s72 = sphi 0, %s71
      %s88 = sphi 0, %s72
      %s94 = sphi 0, %s96
      %s97 = sphi 0, %s94
      %s98 = sphi 0, %s97
      %s114 = sphi 0, %s98
      %s120 = sphi 0, %s122
      %s123 = sphi 0, %s120
      %s124 = sphi 0, %s123
      %s140 = sphi 0, %s124
    $region4: #{tpu_custom_call.1} parent=1 // loop_header_branch
      %19 = sbr.rel (%p17) target = $region8
    $region5: #{tpu_custom_call.1} parent=1 // loop_body
      %s21 = ssub.s32 %s16, 1
      %s22 = ssub.s32 %s16, 2
      %s29 = sadd.s32 1, %s24
      %p30 = scmp.ge.s32.totalorder %s29, 1
      %s31 = scalar_select %p30, 0, %s29
      %s32 = sadd.s32 1, %s23
      %s33 = scalar_select %p30, %s32, %s23
      %p34 = scmp.ge.s32.totalorder %s33, 2
      %s35 = scalar_select %p34, 0, %s33
      %s36 = ssub.s32 %s23, %s35
      %s37 = ssub.s32 %s24, %s31
      %s38 = sor.u32 %s36, %s37
      %p39 = scmp.eq.s32.totalorder %s38, 0
      %s41 = sadd.s32 %s40, 1
      %s42 = scalar_select %p39, %s40, %s41
      %p45 = pneg %p39
      %p46 = scmp.eq.s32.totalorder %s16, 1
      %p47 = por %p45, %p46
      %p48 = scmp.ne.s32.totalorder %s40, %s43
      %p49 = scmp.eq.s32.totalorder %s16, 0
      %p50 = por %p48, %p49
      %p51 = scmp.ne.s32.totalorder %s40, %s43
      %p52 = scmp.eq.s32.totalorder %s21, 1
      %p53 = por %p51, %p52
      %p54 = scmp.ne.s32.totalorder %s43, %s44
      %p55 = scmp.eq.s32.totalorder %s21, 0
      %p56 = por %p54, %p55
      %p57 = scmp.ne.s32.totalorder %s43, %s44
      %p58 = scmp.eq.s32.totalorder %s22, 1
      %p59 = por %p57, %p58
      %p61 = scmp.ne.s32.totalorder %s44, %s60
      %p62 = scmp.eq.s32.totalorder %s22, 0
      %p63 = por %p61, %p62
      %s64 = ssub.s32 %s23, %s35
      %s65 = ssub.s32 %s24, %s31
      %s66 = sor.u32 %s64, %s65
      %p67 = scmp.eq.s32.totalorder %s66, 0
      %s69 = sadd.s32 %s68, 1
      %s70 = scalar_select %p67, %s68, %s69
      %p73 = pneg %p67
      %p74 = scmp.eq.s32.totalorder %s16, 1
      %p75 = por %p73, %p74
      %p76 = scmp.ne.s32.totalorder %s68, %s71
      %p77 = scmp.eq.s32.totalorder %s16, 0
      %p78 = por %p76, %p77
      %p79 = scmp.ne.s32.totalorder %s68, %s71
      %p80 = scmp.eq.s32.totalorder %s21, 1
      %p81 = por %p79, %p80
      %p82 = scmp.ne.s32.totalorder %s71, %s72
      %p83 = scmp.eq.s32.totalorder %s21, 0
      %p84 = por %p82, %p83
      %p85 = scmp.ne.s32.totalorder %s71, %s72
      %p86 = scmp.eq.s32.totalorder %s22, 1
      %p87 = por %p85, %p86
      %p89 = scmp.ne.s32.totalorder %s72, %s88
      %p90 = scmp.eq.s32.totalorder %s22, 0
      %p91 = por %p89, %p90
      %s92 = ssub.s32 %s23, %s35
      %p93 = scmp.eq.s32.totalorder %s92, 0
      %s95 = sadd.s32 %s94, 1
      %s96 = scalar_select %p93, %s94, %s95
      %p99 = pneg %p93
      %p100 = scmp.eq.s32.totalorder %s16, 1
      %p101 = por %p99, %p100
      %p102 = scmp.ne.s32.totalorder %s94, %s97
      %p103 = scmp.eq.s32.totalorder %s16, 0
      %p104 = por %p102, %p103
      %p105 = scmp.ne.s32.totalorder %s94, %s97
      %p106 = scmp.eq.s32.totalorder %s21, 1
      %p107 = por %p105, %p106
      %p108 = scmp.ne.s32.totalorder %s97, %s98
      %p109 = scmp.eq.s32.totalorder %s21, 0
      %p110 = por %p108, %p109
      %p111 = scmp.ne.s32.totalorder %s97, %s98
      %p112 = scmp.eq.s32.totalorder %s22, 1
      %p113 = por %p111, %p112
      %p115 = scmp.ne.s32.totalorder %s98, %s114
      %p116 = scmp.eq.s32.totalorder %s22, 0
      %p117 = por %p115, %p116
      %s118 = ssub.s32 %s23, %s35
      %p119 = scmp.eq.s32.totalorder %s118, 0
      %s121 = sadd.s32 %s120, 1
      %s122 = scalar_select %p119, %s120, %s121
      %p125 = pneg %p119
      %p126 = scmp.eq.s32.totalorder %s16, 1
      %p127 = por %p125, %p126
      %p128 = scmp.ne.s32.totalorder %s120, %s123
      %p129 = scmp.eq.s32.totalorder %s16, 0
      %p130 = por %p128, %p129
      %p131 = scmp.ne.s32.totalorder %s120, %s123
      %p132 = scmp.eq.s32.totalorder %s21, 1
      %p133 = por %p131, %p132
      %p134 = scmp.ne.s32.totalorder %s123, %s124
      %p135 = scmp.eq.s32.totalorder %s21, 0
      %p136 = por %p134, %p135
      %p137 = scmp.ne.s32.totalorder %s123, %s124
      %p138 = scmp.eq.s32.totalorder %s22, 1
      %p139 = por %p137, %p138
      %p141 = scmp.ne.s32.totalorder %s124, %s140
      %p142 = scmp.eq.s32.totalorder %s22, 0
      %p143 = por %p141, %p142
      %p144 = scmp.le.s32.totalorder 1, %s16
      %p145 = scmp.lt.s32.totalorder %s16, 3
      %p146 = pnand %p144, %p145
      %p147 = pneg %p146
      // Predicated region
      $region9: #{tpu_custom_call.1} parent=5 // pred_check
        _
      $region10: #{tpu_custom_call.1} parent=5 // pred_check_branch
        %149 = sbr.rel (%p146) target = $region12
      $region11: #{tpu_custom_call.1} parent=5 // pred_region
        %s150 = ssub.s32 %s16, 1
      $region12: #{tpu_custom_call.1} parent=5 // pred_fallthru
        _
      %p151 = scmp.lt.s32.totalorder %s16, 2
      // Predicated region
      $region13: #{tpu_custom_call.1} parent=5 // pred_check
        %p152 = pneg %p151
      $region14: #{tpu_custom_call.1} parent=5 // pred_check_branch
        %154 = sbr.rel (%p152) target = $region16
      $region15: #{tpu_custom_call.1} parent=5 // pred_region
        // Predicated region
        $region17: #{tpu_custom_call.1} parent=15 // pred_check
          %p155 = pneg %p50
        $region18: #{tpu_custom_call.1} parent=15 // pred_check_branch
          %157 = sbr.rel (%p155) target = $region20
        $region19: #{tpu_custom_call.1} parent=15 // pred_region
          %s158 = sand.u32 %s40, 1
          %s159 = scalar_lea.sflag [#allocation3], %s158
          %s160 = sand.u32 %s40, 1
          %s161 = smul.addr %s160, 32
          %s162 = scalar_lea.vmem [#allocation2], %s161
          %s163 = smul.u32 2, %s23
          %s164 = smul.u32 2, %s24
          %s166 = ssub.s32 512, 512
          %167 = vsyncadd %s159, %s166
          %s168 = smul.addr %s163, 2
          %s169 = sadd.s32 %s164, %s168
          %s170 = smul.addr %s169, 128
          %s171 = scalar_lea.hbm %s0, %s170
          %s172 = sshll.u32 %s162, 4
          %s173 = int_to_ptr.vmem [resolvable:$true] %s172
          %178 = dma.hbm_to_vmem [thread:$0]  %s171, 512, %s173, %s159, 256, 256, 16
        $region20: #{tpu_custom_call.1} parent=15 // pred_fallthru
          _
        // Predicated region
        $region21: #{tpu_custom_call.1} parent=15 // pred_check
          %p179 = pneg %p78
        $region22: #{tpu_custom_call.1} parent=15 // pred_check_branch
          %181 = sbr.rel (%p179) target = $region24
        $region23: #{tpu_custom_call.1} parent=15 // pred_region
          %s182 = sand.u32 %s68, 1
          %s183 = scalar_lea.sflag [#allocation5], %s182
          %s184 = sand.u32 %s68, 1
          %s185 = smul.addr %s184, 32
          %s186 = scalar_lea.vmem [#allocation4], %s185
          %s187 = smul.u32 2, %s23
          %s188 = smul.u32 2, %s24
          %s190 = ssub.s32 512, 512
          %191 = vsyncadd %s183, %s190
          %s192 = smul.addr %s187, 2
          %s193 = sadd.s32 %s188, %s192
          %s194 = smul.addr %s193, 128
          %s195 = scalar_lea.hbm %s1, %s194
          %s196 = sshll.u32 %s186, 4
          %s197 = int_to_ptr.vmem [resolvable:$true] %s196
          %202 = dma.hbm_to_vmem [thread:$0]  %s195, 512, %s197, %s183, 256, 256, 16
        $region24: #{tpu_custom_call.1} parent=15 // pred_fallthru
          _
      $region16: #{tpu_custom_call.1} parent=5 // pred_fallthru
        _
      %p203 = scmp.le.s32.totalorder 1, %s16
      %p204 = scmp.lt.s32.totalorder %s16, 3
      %p205 = pnand %p203, %p204
      %p206 = pneg %p205
      // Predicated region
      $region25: #{tpu_custom_call.1} parent=5 // pred_check
        _
      $region26: #{tpu_custom_call.1} parent=5 // pred_check_branch
        %208 = sbr.rel (%p205) target = $region28
      $region27: #{tpu_custom_call.1} parent=5 // pred_region
        %s209 = ssub.s32 %s16, 1
        %s210 = sand.u32 %s43, 1
        %s211 = scalar_lea.sflag [#allocation3], %s210
        %s212 = sand.u32 %s43, 1
        %s213 = smul.addr %s212, 32
        %s214 = scalar_lea.vmem [#allocation2], %s213
        // Predicated region
        $region29: #{tpu_custom_call.1} parent=27 // pred_check
          %p215 = pneg %p56
        $region30: #{tpu_custom_call.1} parent=27 // pred_check_branch
          %217 = sbr.rel (%p215) target = $region32
        $region31: #{tpu_custom_call.1} parent=27 // pred_region
          %218 = dma.done %s211, 512
        $region32: #{tpu_custom_call.1} parent=27 // pred_fallthru
          _
        %s219 = sand.u32 %s71, 1
        %s220 = scalar_lea.sflag [#allocation5], %s219
        %s221 = sand.u32 %s71, 1
        %s222 = smul.addr %s221, 32
        %s223 = scalar_lea.vmem [#allocation4], %s222
        // Predicated region
        $region33: #{tpu_custom_call.1} parent=27 // pred_check
          %p224 = pneg %p84
        $region34: #{tpu_custom_call.1} parent=27 // pred_check_branch
          %226 = sbr.rel (%p224) target = $region36
        $region35: #{tpu_custom_call.1} parent=27 // pred_region
          %227 = dma.done %s220, 512
        $region36: #{tpu_custom_call.1} parent=27 // pred_fallthru
          _
        %s228 = sand.u32 %s43, 1
        %s229 = scalar_lea.sflag [#allocation3], %s228
        %s230 = sand.u32 %s43, 1
        %s231 = smul.addr %s230, 32
        %s232 = scalar_lea.vmem [#allocation2], %s231
        %p233 = pneg %p56
        %p234 = pneg %p53
        %s235 = sand.u32 %s71, 1
        %s236 = scalar_lea.sflag [#allocation5], %s235
        %s237 = sand.u32 %s71, 1
        %s238 = smul.addr %s237, 32
        %s239 = scalar_lea.vmem [#allocation4], %s238
        %p240 = pneg %p84
        %p241 = pneg %p81
        %p242 = pneg %p110
        %p243 = pneg %p107
        %s244 = smul.u32 2, %s25
        %p245 = scmp.lt.s32.totalorder %s244, 3
        %s246 = scalar_select %p245, %s244, 3
        %s247 = smul.addr %s246, 8
        %s248 = scalar_lea.vmem %s2, %s247
        %p249 = pneg %p136
        %p250 = pneg %p133
        %s251 = smul.u32 2, %s25
        %p252 = scmp.lt.s32.totalorder %s251, 3
        %s253 = scalar_select %p252, %s251, 3
        %s254 = smul.addr %s253, 8
        %s255 = scalar_lea.vmem %s3, %s254
        %s256 = smul.u32 2, %s25
        %s257 = smul.u32 2, %s26
        %s258 = smul.u32 2, %s25
        %s259 = smul.u32 2, %s26
        %s260 = smul.u32 2, %s25
        %p261 = scmp.lt.s32.totalorder %s260, 3
        %s262 = scalar_select %p261, %s260, 3
        %s263 = smul.addr %s262, 8
        %s264 = scalar_lea.vmem %s2, %s263
        %s265 = smul.u32 2, %s25
        %s266 = smul.u32 2, %s25
        %p267 = scmp.lt.s32.totalorder %s266, 3
        %s268 = scalar_select %p267, %s266, 3
        %s269 = smul.addr %s268, 8
        %s270 = scalar_lea.vmem %s3, %s269
        %s271 = smul.u32 2, %s25
        %p272 = scmp.eq.s32.totalorder %s26, 0
        // Predicated region
        $region37: #{tpu_custom_call.1} parent=27 // pred_check
          %p273 = pneg %p272
        $region38: #{tpu_custom_call.1} parent=27 // pred_check_branch
          %275 = sbr.rel (%p273) target = $region40
        $region39: #{tpu_custom_call.1} parent=27 // pred_region
          %vm276 = vcmask 7168
          %277 = vst.msk [vmem:[%s264] sm:$0xff] %vm276, 0.0
          %278 = vst.msk [vmem:[%s264 + $0x8] sm:$0xff] %vm276, 0.0
          %279 = vst.msk [vmem:[%s270] sm:$0xff] %vm276, 0.0
          %280 = vst.msk [vmem:[%s270 + $0x8] sm:$0xff] %vm276, 0.0
        $region40: #{tpu_custom_call.1} parent=27 // pred_fallthru
          _
        %v281 = vld [vmem:[%s214] sm:$0xff]
        %v282 = vld [vmem:[%s214 + $0x8] sm:$0xff]
        %v283 = vld [vmem:[%s214 + $0x10] sm:$0xff]
        %v284 = vld [vmem:[%s214 + $0x18] sm:$0xff]
        %v285 = vld [vmem:[%s223] sm:$0xff]
        %v286 = vld [vmem:[%s223 + $0x8] sm:$0xff]
        %v287 = vld [vmem:[%s223 + $0x10] sm:$0xff]
        %v288 = vld [vmem:[%s223 + $0x18] sm:$0xff]
        %v289 = vld [vmem:[%s264] sm:$0xff]
        %v290 = vld [vmem:[%s264 + $0x8] sm:$0xff]
        %v291 = vadd.f32 %v281, %v282
        %292 = vadd.xlane.f32.xlu0 %v291
        %v293 = vpop.xlane.xlu0 %292
        %v294 = vadd.f32 %v283, %v284
        %295 = vadd.xlane.f32.xlu0 %v294
        %v296 = vpop.xlane.xlu0 %295
        %v297 = vadd.f32 %v289, %v293
        %v298 = vadd.f32 %v290, %v296
        %vm299 = vcmask 7168
        %300 = vst.msk [vmem:[%s264] sm:$0xff] %vm299, %v297
        %301 = vst.msk [vmem:[%s264 + $0x8] sm:$0xff] %vm299, %v298
        %v302 = vld [vmem:[%s270] sm:$0xff]
        %v303 = vld [vmem:[%s270 + $0x8] sm:$0xff]
        %v304 = vadd.f32 %v285, %v286
        %305 = vadd.xlane.f32.xlu0 %v304
        %v306 = vpop.xlane.xlu0 %305
        %v307 = vadd.f32 %v287, %v288
        %308 = vadd.xlane.f32.xlu0 %v307
        %v309 = vpop.xlane.xlu0 %308
        %v310 = vadd.f32 %v302, %v306
        %v311 = vadd.f32 %v303, %v309
        %312 = vst.msk [vmem:[%s270] sm:$0xff] %vm299, %v310
        %313 = vst.msk [vmem:[%s270 + $0x8] sm:$0xff] %vm299, %v311
        %s314 = smul.u32 2, %s25
        %p315 = scmp.lt.s32.totalorder %s314, 3
        %s316 = scalar_select %p315, %s314, 3
        %s317 = smul.addr %s316, 8
        %s318 = scalar_lea.vmem %s2, %s317
        %s319 = smul.u32 2, %s25
        %p320 = scmp.lt.s32.totalorder %s319, 3
        %s321 = scalar_select %p320, %s319, 3
        %s322 = smul.addr %s321, 8
        %s323 = scalar_lea.vmem %s3, %s322
        // Predicated region
        $region41: #{tpu_custom_call.1} parent=27 // pred_check
          %p324 = pneg %p107
        $region42: #{tpu_custom_call.1} parent=27 // pred_check_branch
          %326 = sbr.rel (%p324) target = $region44
        $region43: #{tpu_custom_call.1} parent=27 // pred_region
          %s327 = smul.u32 2, %s25
        $region44: #{tpu_custom_call.1} parent=27 // pred_fallthru
          _
        // Predicated region
        $region45: #{tpu_custom_call.1} parent=27 // pred_check
          %p328 = pneg %p133
        $region46: #{tpu_custom_call.1} parent=27 // pred_check_branch
          %330 = sbr.rel (%p328) target = $region48
        $region47: #{tpu_custom_call.1} parent=27 // pred_region
          %s331 = smul.u32 2, %s25
        $region48: #{tpu_custom_call.1} parent=27 // pred_fallthru
          _
      $region28: #{tpu_custom_call.1} parent=5 // pred_fallthru
        _
      %p332 = scmp.le.s32.totalorder 2, %s16
      // Predicated region
      $region49: #{tpu_custom_call.1} parent=5 // pred_check
        %p333 = pneg %p332
      $region50: #{tpu_custom_call.1} parent=5 // pred_check_branch
        %335 = sbr.rel (%p333) target = $region52
      $region51: #{tpu_custom_call.1} parent=5 // pred_region
        %s336 = ssub.s32 %s16, 2
        // Predicated region
        $region53: #{tpu_custom_call.1} parent=51 // pred_check
          %p337 = pneg %p113
        $region54: #{tpu_custom_call.1} parent=51 // pred_check_branch
          %339 = sbr.rel (%p337) target = $region56
        $region55: #{tpu_custom_call.1} parent=51 // pred_region
          %s340 = smul.u32 2, %s27
          %p341 = scmp.lt.s32.totalorder %s340, 3
          %s342 = scalar_select %p341, %s340, 3
          %s343 = smul.addr %s342, 8
          %s344 = scalar_lea.vmem %s2, %s343
        $region56: #{tpu_custom_call.1} parent=51 // pred_fallthru
          _
        // Predicated region
        $region57: #{tpu_custom_call.1} parent=51 // pred_check
          %p345 = pneg %p139
        $region58: #{tpu_custom_call.1} parent=51 // pred_check_branch
          %347 = sbr.rel (%p345) target = $region60
        $region59: #{tpu_custom_call.1} parent=51 // pred_region
          %s348 = smul.u32 2, %s27
          %p349 = scmp.lt.s32.totalorder %s348, 3
          %s350 = scalar_select %p349, %s348, 3
          %s351 = smul.addr %s350, 8
          %s352 = scalar_lea.vmem %s3, %s351
        $region60: #{tpu_custom_call.1} parent=51 // pred_fallthru
          _
      $region52: #{tpu_custom_call.1} parent=5 // pred_fallthru
        _
    $region6: #{tpu_custom_call.1} parent=1 // loop_footer
      %s20 = sadd.s32 1, %s16
    $region7: #{tpu_custom_call.1} parent=1 // loop_footer_branch
      %15 = sbr.rel target = $region3
    $region8: #{tpu_custom_call.1} parent=1 // loop_exit
      _
    %353 = vsyncpa [#allocation3], 1
    %s354 = scalar_lea.sflag [#allocation3], 1
    %355 = vsyncpa %s354, 1
    %356 = vsyncpa [#allocation5], 1
    %s357 = scalar_lea.sflag [#allocation5], 1
    %358 = vsyncpa %s357, 1

</llo_original>
